<compile_context>
chip_gen: v7x
topology: tpu7x:2x2x1
jax: 0.10.0
libtpu: 0.0.40
codegen_flags: <defaults>
</compile_context>

<pallas_src>
import functools
import math

import jax
import jax.numpy as jnp
from jax.experimental import pallas as pl
from jax.experimental.pallas import tpu as pltpu


# Large finite negative bias (safer than finfo.min w.r.t. overflow / NaN).
# Note: rows that are *fully* masked diverge from torch's masked_fill semantics
# (which yields a uniform distribution); every practical mask has >=1 valid key.
DEFAULT_MASK_VALUE = -0.7 * float(jnp.finfo(jnp.float32).max)


def _flash_attention_kernel(*args, scale, has_bias):
    if has_bias:
        q_ref, k_ref, v_ref, bias_ref, o_ref, m_sc, l_sc, acc_sc = args
    else:
        q_ref, k_ref, v_ref, o_ref, m_sc, l_sc, acc_sc = args
        bias_ref = None

    kv_idx = pl.program_id(3)

    @pl.when(kv_idx == 0)
    def _init():
        m_sc[...] = jnp.full_like(m_sc, -jnp.inf)
        l_sc[...] = jnp.zeros_like(l_sc)
        acc_sc[...] = jnp.zeros_like(acc_sc)

    q = q_ref[0] * scale          # (hblk, tq, D), scaled in the input dtype
    k = k_ref[0]                  # (hblk, tk, D)
    v = v_ref[0]                  # (hblk, tk, D)

    # QK^T: contract the last dim of both operands — no explicit K transpose.
    s = jnp.einsum("hqd,hkd->hqk", q, k, preferred_element_type=jnp.float32)

    if has_bias:
        # additive mask bias (0 keep / large-negative masked), shared by every
        # head in this block.
        s = s + bias_ref[0][None, :, :].astype(jnp.float32)

    # online softmax update
    m_prev = m_sc[...]
    m_new = jnp.maximum(m_prev, jnp.max(s, axis=-1, keepdims=True))
    alpha = jnp.exp(m_prev - m_new)
    p = jnp.exp(s - m_new)
    l_sc[...] = alpha * l_sc[...] + jnp.sum(p, axis=-1, keepdims=True)
    acc_sc[...] = alpha * acc_sc[...] + jnp.einsum(
        "hqk,hkd->hqd", p.astype(v.dtype), v,
        preferred_element_type=jnp.float32)
    m_sc[...] = m_new

    # TODO(synk): dropout on attention probs is identity at inference time;
    # training-mode stochastic dropout is not implemented here.

    @pl.when(kv_idx == pl.num_programs(3) - 1)
    def _finalize():
        inv_l = pl.reciprocal(l_sc[...], approx=True)   # EUP vrcp (free slot)
        o_ref[0] = (acc_sc[...] * inv_l).astype(o_ref.dtype)


def _largest_divisor_leq(n, cap):
    for d in range(min(n, cap), 0, -1):
        if n % d == 0:
            return d
    return 1


def _pick_tile(dim, cap):
    """Pick a tile: full dim if small, else the largest 128-multiple divisor
    <= cap, else fall back to the full (untiled) extent (always legal)."""
    if dim <= cap:
        return dim
    t = cap
    while t >= 128:
        if dim % t == 0:
            return t
        t //= 2
    return dim


def self_attention(queries, keys, values, attention_mask=None,
                   *, q_tile=256, kv_tile=512, head_block=4):
    """Pallas flash-style scaled dot-product attention.

    queries, keys, values: [B, H, S, D]
    attention_mask:        [B, S, S] (0 -> masked out), optional
    returns:               [B, H, S, D]
    """
    B, H, S, D = queries.shape
    assert keys.shape == (B, H, S, D) and values.shape == (B, H, S, D)

    tq = _pick_tile(S, q_tile)
    tk = _pick_tile(S, kv_tile)
    hblk = _largest_divisor_leq(H, head_block)

    grid = (B, H // hblk, S // tq, S // tk)
    scale = 1.0 / math.sqrt(D)

    qo_spec = pl.BlockSpec((1, hblk, tq, D), lambda b, h, qi, ki: (b, h, qi, 0))
    kv_spec = pl.BlockSpec((1, hblk, tk, D), lambda b, h, qi, ki: (b, h, 0, ki))

    has_bias = attention_mask is not None
    in_specs = [qo_spec, kv_spec, kv_spec]
    inputs = [queries, keys, values]
    if has_bias:
        assert attention_mask.shape == (B, S, S)
        # bf16 additive bias: half the HBM traffic of the original int32 mask,
        # and a single VPU add in the kernel instead of compare+select.
        bias = jnp.where(attention_mask == 0,
                         DEFAULT_MASK_VALUE, 0.0).astype(jnp.bfloat16)
        in_specs.append(
            pl.BlockSpec((1, tq, tk), lambda b, h, qi, ki: (b, qi, ki)))
        inputs.append(bias)

    kernel = functools.partial(
        _flash_attention_kernel, scale=scale, has_bias=has_bias)

    itemsize = queries.dtype.itemsize
    bytes_accessed = 4 * B * H * S * D * itemsize          # Q, K, V, O
    if has_bias:
        bytes_accessed += B * S * S * 2                     # bf16 bias
    cost = pl.CostEstimate(
        flops=4 * B * H * S * S * D,
        transcendentals=B * H * S * S,
        bytes_accessed=bytes_accessed,
    )

    return pl.pallas_call(
        kernel,
        out_shape=jax.ShapeDtypeStruct((B, H, S, D), queries.dtype),
        grid_spec=pltpu.PrefetchScalarGridSpec(
            num_scalar_prefetch=0,
            grid=grid,
            in_specs=in_specs,
            out_specs=qo_spec,
            scratch_shapes=[
                pltpu.VMEM((hblk, tq, 1), jnp.float32),    # running max m
                pltpu.VMEM((hblk, tq, 1), jnp.float32),    # running denom l
                pltpu.VMEM((hblk, tq, D), jnp.float32),    # output accumulator
            ],
        ),
        compiler_params=pltpu.CompilerParams(
            dimension_semantics=("parallel", "parallel", "parallel", "arbitrary"),
            vmem_limit_bytes=32 * 1024 * 1024,
        ),
        cost_estimate=cost,
    )(*inputs)


def _reference(queries, keys, values, attention_mask):
    key_dim = keys.shape[-1]
    scores = jnp.einsum(
        "bhqd,bhkd->bhqk", queries / math.sqrt(key_dim), keys
    ).astype(jnp.float32)
    if attention_mask is not None:
        mask = attention_mask[:, None, :, :]
        scores = jnp.where(mask == 0, jnp.finfo(jnp.float32).min, scores)
    probs = jax.nn.softmax(scores, axis=-1)
    return jnp.einsum("bhqk,bhkd->bhqd", probs.astype(values.dtype), values)


if __name__ == "__main__":
    B, H, S, D = 2, 2, 8, 32
    key = jax.random.PRNGKey(0)
    kq, kk, kv = jax.random.split(key, 3)

    queries = jax.random.normal(kq, (B, H, S, D), dtype=jnp.float32)
    keys = jax.random.normal(kk, (B, H, S, D), dtype=jnp.float32)
    values = jax.random.normal(kv, (B, H, S, D), dtype=jnp.float32)
    # deterministic 0/1 causal-ish mask, shape [B, S, S]
    attention_mask = jnp.tril(
        jnp.ones((S, S), dtype=jnp.int32))[None].repeat(B, axis=0)

    out_masked = jax.block_until_ready(
        self_attention(queries, keys, values, attention_mask))
    out_nomask = jax.block_until_ready(
        self_attention(queries, keys, values, None))

    ref_masked = _reference(queries, keys, values, attention_mask)
    ref_nomask = _reference(queries, keys, values, None)

    assert out_masked.shape == (B, H, S, D)
    # Tolerance is loose enough for the approximate EUP reciprocal in the
    # softmax normalization, tight enough to catch masking/softmax bugs.
    assert jnp.allclose(out_masked, ref_masked, atol=1e-2, rtol=1e-2)
    assert jnp.allclose(out_nomask, ref_nomask, atol=1e-2, rtol=1e-2)

    print("KERNEL_OK")
</pallas_src>

<mosaic_0001>
module attributes {stable_mosaic.version = 11 : i64} {
  func.func @_flash_attention_kernel(%arg0: i32, %arg1: i32, %arg2: i32, %arg3: i32, %arg4: memref<1x2x8x32xf32, #tpu.memory_space<vmem>>, %arg5: memref<1x2x8x32xf32, #tpu.memory_space<vmem>>, %arg6: memref<1x2x8x32xf32, #tpu.memory_space<vmem>>, %arg7: memref<1x8x8xbf16, #tpu.memory_space<vmem>>, %arg8: memref<1x2x8x32xf32, #tpu.memory_space<vmem>>, %arg9: memref<2x8x1xf32, #tpu.memory_space<vmem>>, %arg10: memref<2x8x1xf32, #tpu.memory_space<vmem>>, %arg11: memref<2x8x32xf32, #tpu.memory_space<vmem>>) attributes {dimension_semantics = [#tpu.dimension_semantics<parallel>, #tpu.dimension_semantics<parallel>, #tpu.dimension_semantics<parallel>, #tpu.dimension_semantics<arbitrary>], iteration_bounds = array<i64: 2, 1, 1, 1>, scalar_prefetch = 0 : i64, scratch_operands = 3 : i64, tpu.core_type = #tpu.core_type<tc>, window_params = [{transform_indices = @transform_0, window_bounds = array<i64: 1, 2, 8, 32>}, {transform_indices = @transform_1, window_bounds = array<i64: 1, 2, 8, 32>}, {transform_indices = @transform_2, window_bounds = array<i64: 1, 2, 8, 32>}, {transform_indices = @transform_3, window_bounds = array<i64: 1, 8, 8>}, {transform_indices = @transform_4, window_bounds = array<i64: 1, 2, 8, 32>}]} {
    %c0_i32 = arith.constant 0 : i32
    %0 = arith.cmpi eq, %arg3, %c0_i32 : i32
    %1 = arith.extui %0 : i1 to i32
    %c0_i32_0 = arith.constant 0 : i32
    %2 = arith.cmpi ne, %1, %c0_i32_0 : i32
    scf.if %2 {
      %cst_39 = arith.constant 0xFF800000 : f32
      %43 = vector.broadcast %cst_39 : f32 to vector<2x8x1xf32>
      %c0_40 = arith.constant 0 : index
      %c0_41 = arith.constant 0 : index
      %c0_42 = arith.constant 0 : index
      %44 = vector.load %arg9[%c0_40, %c0_41, %c0_42] : memref<2x8x1xf32, #tpu.memory_space<vmem>>, vector<2x8x1xf32>
      tpu.vector_store %arg9[%c0_40, %c0_41, %c0_42], %43 {strides = array<i32>} : memref<2x8x1xf32, #tpu.memory_space<vmem>>, vector<2x8x1xf32>,
      %cst_43 = arith.constant 0.000000e+00 : f32
      %45 = vector.broadcast %cst_43 : f32 to vector<2x8x1xf32>
      %c0_44 = arith.constant 0 : index
      %c0_45 = arith.constant 0 : index
      %c0_46 = arith.constant 0 : index
      %46 = vector.load %arg10[%c0_44, %c0_45, %c0_46] : memref<2x8x1xf32, #tpu.memory_space<vmem>>, vector<2x8x1xf32>
      tpu.vector_store %arg10[%c0_44, %c0_45, %c0_46], %45 {strides = array<i32>} : memref<2x8x1xf32, #tpu.memory_space<vmem>>, vector<2x8x1xf32>,
      %cst_47 = arith.constant 0.000000e+00 : f32
      %47 = vector.broadcast %cst_47 : f32 to vector<2x8x32xf32>
      %c0_48 = arith.constant 0 : index
      %c0_49 = arith.constant 0 : index
      %c0_50 = arith.constant 0 : index
      %48 = vector.load %arg11[%c0_48, %c0_49, %c0_50] : memref<2x8x32xf32, #tpu.memory_space<vmem>>, vector<2x8x32xf32>
      tpu.vector_store %arg11[%c0_48, %c0_49, %c0_50], %47 {strides = array<i32>} : memref<2x8x32xf32, #tpu.memory_space<vmem>>, vector<2x8x32xf32>,
    } else {
    }
    %c0 = arith.constant 0 : index
    %c0_1 = arith.constant 0 : index
    %c0_2 = arith.constant 0 : index
    %c0_3 = arith.constant 0 : index
    %3 = vector.load %arg4[%c0, %c0_1, %c0_2, %c0_3] : memref<1x2x8x32xf32, #tpu.memory_space<vmem>>, vector<1x2x8x32xf32>
    %4 = vector.shape_cast %3 : vector<1x2x8x32xf32> to vector<2x8x32xf32>
    %cst = arith.constant 0.176776692 : f32
    %5 = vector.broadcast %cst : f32 to vector<2x8x32xf32>
    %6 = arith.mulf %4, %5 : vector<2x8x32xf32>
    %c0_4 = arith.constant 0 : index
    %c0_5 = arith.constant 0 : index
    %c0_6 = arith.constant 0 : index
    %c0_7 = arith.constant 0 : index
    %7 = vector.load %arg5[%c0_4, %c0_5, %c0_6, %c0_7] : memref<1x2x8x32xf32, #tpu.memory_space<vmem>>, vector<1x2x8x32xf32>
    %8 = vector.shape_cast %7 : vector<1x2x8x32xf32> to vector<2x8x32xf32>
    %c0_8 = arith.constant 0 : index
    %c0_9 = arith.constant 0 : index
    %c0_10 = arith.constant 0 : index
    %c0_11 = arith.constant 0 : index
    %9 = vector.load %arg6[%c0_8, %c0_9, %c0_10, %c0_11] : memref<1x2x8x32xf32, #tpu.memory_space<vmem>>, vector<1x2x8x32xf32>
    %10 = vector.shape_cast %9 : vector<1x2x8x32xf32> to vector<2x8x32xf32>
    "tpu.trace_start"() <{level = 10 : i32, message = "hqd,hkd->hqk"}> : () -> ()
    %cst_12 = arith.constant dense<0.000000e+00> : vector<2x8x8xf32>
    %11 = tpu.matmul %6, %8, %cst_12 {dimension_numbers = #tpu.dot_dimension_numbers<[2], [2], [1], [1], [0, 0, 0, 1, 1, 1], [0], [0]>} : vector<2x8x32xf32>, vector<2x8x32xf32>, vector<2x8x8xf32> -> vector<2x8x8xf32>
    "tpu.trace_stop"() : () -> ()
    %c0_13 = arith.constant 0 : index
    %c0_14 = arith.constant 0 : index
    %c0_15 = arith.constant 0 : index
    %12 = vector.load %arg7[%c0_13, %c0_14, %c0_15] : memref<1x8x8xbf16, #tpu.memory_space<vmem>>, vector<1x8x8xbf16>
    %13 = vector.shape_cast %12 : vector<1x8x8xbf16> to vector<8x8xbf16>
    %14 = vector.shape_cast %13 : vector<8x8xbf16> to vector<1x8x8xbf16>
    %15 = arith.extf %14 : vector<1x8x8xbf16> to vector<1x8x8xf32>
    %16 = vector.broadcast %15 : vector<1x8x8xf32> to vector<2x8x8xf32>
    %17 = arith.addf %11, %16 : vector<2x8x8xf32>
    %c0_16 = arith.constant 0 : index
    %c0_17 = arith.constant 0 : index
    %c0_18 = arith.constant 0 : index
    %18 = vector.load %arg9[%c0_16, %c0_17, %c0_18] : memref<2x8x1xf32, #tpu.memory_space<vmem>>, vector<2x8x1xf32>
    %cst_19 = arith.constant dense<0xFF800000> : vector<2x8xf32>
    %19 = vector.multi_reduction <maximumf>, %17, %cst_19 [2] : vector<2x8x8xf32> to vector<2x8xf32>
    %20 = vector.shape_cast %19 : vector<2x8xf32> to vector<2x8x1xf32>
    %21 = arith.maximumf %18, %20 : vector<2x8x1xf32>
    %22 = arith.subf %18, %21 : vector<2x8x1xf32>
    %23 = math.exp %22 : vector<2x8x1xf32>
    %24 = vector.broadcast %21 : vector<2x8x1xf32> to vector<2x8x8xf32>
    %25 = arith.subf %17, %24 : vector<2x8x8xf32>
    %26 = math.exp %25 : vector<2x8x8xf32>
    %c0_20 = arith.constant 0 : index
    %c0_21 = arith.constant 0 : index
    %c0_22 = arith.constant 0 : index
    %27 = vector.load %arg10[%c0_20, %c0_21, %c0_22] : memref<2x8x1xf32, #tpu.memory_space<vmem>>, vector<2x8x1xf32>
    %28 = arith.mulf %23, %27 : vector<2x8x1xf32>
    %cst_23 = arith.constant dense<0.000000e+00> : vector<2x8xf32>
    %29 = vector.multi_reduction <add>, %26, %cst_23 [2] : vector<2x8x8xf32> to vector<2x8xf32>
    %30 = vector.shape_cast %29 : vector<2x8xf32> to vector<2x8x1xf32>
    %31 = arith.addf %28, %30 : vector<2x8x1xf32>
    %c0_24 = arith.constant 0 : index
    %c0_25 = arith.constant 0 : index
    %c0_26 = arith.constant 0 : index
    %32 = vector.load %arg10[%c0_24, %c0_25, %c0_26] : memref<2x8x1xf32, #tpu.memory_space<vmem>>, vector<2x8x1xf32>
    tpu.vector_store %arg10[%c0_24, %c0_25, %c0_26], %31 {strides = array<i32>} : memref<2x8x1xf32, #tpu.memory_space<vmem>>, vector<2x8x1xf32>,
    %c0_27 = arith.constant 0 : index
    %c0_28 = arith.constant 0 : index
    %c0_29 = arith.constant 0 : index
    %33 = vector.load %arg11[%c0_27, %c0_28, %c0_29] : memref<2x8x32xf32, #tpu.memory_space<vmem>>, vector<2x8x32xf32>
    %34 = vector.broadcast %23 : vector<2x8x1xf32> to vector<2x8x32xf32>
    %35 = arith.mulf %34, %33 : vector<2x8x32xf32>
    "tpu.trace_start"() <{level = 10 : i32, message = "hqk,hkd->hqd"}> : () -> ()
    %cst_30 = arith.constant dense<0.000000e+00> : vector<2x8x32xf32>
    %36 = tpu.matmul %26, %10, %cst_30 {dimension_numbers = #tpu.dot_dimension_numbers<[2], [1], [1], [2], [0, 0, 0, 1, 1, 2], [0], [0]>} : vector<2x8x8xf32>, vector<2x8x32xf32>, vector<2x8x32xf32> -> vector<2x8x32xf32>
    "tpu.trace_stop"() : () -> ()
    %37 = arith.addf %35, %36 : vector<2x8x32xf32>
    %c0_31 = arith.constant 0 : index
    %c0_32 = arith.constant 0 : index
    %c0_33 = arith.constant 0 : index
    %38 = vector.load %arg11[%c0_31, %c0_32, %c0_33] : memref<2x8x32xf32, #tpu.memory_space<vmem>>, vector<2x8x32xf32>
    tpu.vector_store %arg11[%c0_31, %c0_32, %c0_33], %37 {strides = array<i32>} : memref<2x8x32xf32, #tpu.memory_space<vmem>>, vector<2x8x32xf32>,
    %c0_34 = arith.constant 0 : index
    %c0_35 = arith.constant 0 : index
    %c0_36 = arith.constant 0 : index
    %39 = vector.load %arg9[%c0_34, %c0_35, %c0_36] : memref<2x8x1xf32, #tpu.memory_space<vmem>>, vector<2x8x1xf32>
    tpu.vector_store %arg9[%c0_34, %c0_35, %c0_36], %21 {strides = array<i32>} : memref<2x8x1xf32, #tpu.memory_space<vmem>>, vector<2x8x1xf32>,
    %c0_i32_37 = arith.constant 0 : i32
    %40 = arith.cmpi eq, %arg3, %c0_i32_37 : i32
    %41 = arith.extui %40 : i1 to i32
    %c0_i32_38 = arith.constant 0 : i32
    %42 = arith.cmpi ne, %41, %c0_i32_38 : i32
    scf.if %42 {
      %c0_39 = arith.constant 0 : index
      %c0_40 = arith.constant 0 : index
      %c0_41 = arith.constant 0 : index
      %43 = vector.load %arg10[%c0_39, %c0_40, %c0_41] : memref<2x8x1xf32, #tpu.memory_space<vmem>>, vector<2x8x1xf32>
      %44 = tpu.reciprocal %43 {approx = true} : vector<2x8x1xf32> -> vector<2x8x1xf32>
      %c0_42 = arith.constant 0 : index
      %c0_43 = arith.constant 0 : index
      %c0_44 = arith.constant 0 : index
      %45 = vector.load %arg11[%c0_42, %c0_43, %c0_44] : memref<2x8x32xf32, #tpu.memory_space<vmem>>, vector<2x8x32xf32>
      %46 = vector.broadcast %44 : vector<2x8x1xf32> to vector<2x8x32xf32>
      %47 = arith.mulf %45, %46 : vector<2x8x32xf32>
      %c0_45 = arith.constant 0 : index
      %c0_46 = arith.constant 0 : index
      %c0_47 = arith.constant 0 : index
      %c0_48 = arith.constant 0 : index
      %48 = vector.load %arg8[%c0_45, %c0_46, %c0_47, %c0_48] : memref<1x2x8x32xf32, #tpu.memory_space<vmem>>, vector<1x2x8x32xf32>
      %49 = vector.shape_cast %48 : vector<1x2x8x32xf32> to vector<2x8x32xf32>
      %50 = vector.shape_cast %47 : vector<2x8x32xf32> to vector<1x2x8x32xf32>
      tpu.vector_store %arg8[%c0_45, %c0_46, %c0_47, %c0_48], %50 {strides = array<i32>} : memref<1x2x8x32xf32, #tpu.memory_space<vmem>>, vector<1x2x8x32xf32>,
    } else {
    }
    return
  }
  func.func @transform_0(%arg0: i32, %arg1: i32, %arg2: i32, %arg3: i32) -> (i32, i32, i32, i32) {
    %c0_i32 = arith.constant 0 : i32
    %c0_i32_0 = arith.constant 0 : i32
    return %arg0, %arg1, %arg2, %c0_i32 : i32, i32, i32, i32
  }
  func.func @transform_1(%arg0: i32, %arg1: i32, %arg2: i32, %arg3: i32) -> (i32, i32, i32, i32) {
    %c0_i32 = arith.constant 0 : i32
    %c0_i32_0 = arith.constant 0 : i32
    return %arg0, %arg1, %c0_i32, %arg3 : i32, i32, i32, i32
  }
  func.func @transform_2(%arg0: i32, %arg1: i32, %arg2: i32, %arg3: i32) -> (i32, i32, i32, i32) {
    %c0_i32 = arith.constant 0 : i32
    %c0_i32_0 = arith.constant 0 : i32
    return %arg0, %arg1, %c0_i32, %arg3 : i32, i32, i32, i32
  }
  func.func @transform_3(%arg0: i32, %arg1: i32, %arg2: i32, %arg3: i32) -> (i32, i32, i32) {
    %c0_i32 = arith.constant 0 : i32
    return %arg0, %arg2, %arg3 : i32, i32, i32
  }
  func.func @transform_4(%arg0: i32, %arg1: i32, %arg2: i32, %arg3: i32) -> (i32, i32, i32, i32) {
    %c0_i32 = arith.constant 0 : i32
    %c0_i32_0 = arith.constant 0 : i32
    return %arg0, %arg1, %arg2, %c0_i32 : i32, i32, i32, i32
  }
}

</mosaic_0001>

<llo_original>
// kernel: tpu_custom_call.1
$region0: #{tpu_custom_call.1}
  #allocation0 [shape = 'u32[]', space=smem, size = 0x4, offset = 0x4, fixed_abs, tag = 'smem constant byte address 0x4 - core index']
  #allocation1 [shape = 'u32[144,128]{1,0:T(1,128)}', space=vmem, size = 0x12000, scoped, tag = 'internal scratch']
  #allocation2 [shape = 'f32[2,8,1]{2,1,0:T(8,128)}', space=vmem, size = 0x2000, scoped, tag = 'scratch operand']
  #allocation3 [shape = 'f32[2,8,1]{2,1,0:T(8,128)}', space=vmem, size = 0x2000, scoped, tag = 'scratch operand']
  #allocation4 [shape = 'f32[2,8,32]{2,1,0:T(8,128)}', space=vmem, size = 0x2000, scoped, tag = 'scratch operand']
  %s0 = inlined_call_operand.hbm [shape: f32[2,2,8,32], index: 0, kind: input, shape index: {}]
  %s1 = inlined_call_operand.hbm [shape: f32[2,2,8,32], index: 1, kind: input, shape index: {}]
  %s2 = inlined_call_operand.hbm [shape: f32[2,2,8,32], index: 2, kind: input, shape index: {}]
  %s3 = inlined_call_operand.vmem [shape: bf16[2,8,8], index: 3, kind: input, shape index: {}]
  %s4 = inlined_call_operand.hbm [shape: f32[2,2,8,32], index: 4, kind: output, shape index: {}]
  %s5 = sld [smem:[#allocation0]]
  $region69: #{tpu_custom_call.1} parent=0
    _
  %s7 = ssub.s32 1, %s5
  %s8 = scalar_select 0, %s7, %s5
  $region1: #{tpu_custom_call.1} parent=0
    #allocation5 [shape = 'u8[16384]{0}', space=vmem, size = 0x4000, scoped, tag = 'input window, operand 0']
    #allocation6 [shape = 's32[2]{0}', space=sflag, size = 0x8, scoped, tag = 'scoped memory for tpu_custom_call.1']
    #allocation7 [shape = 's32[2]{0}', space=sflag, size = 0x8, scoped, tag = 'scoped memory for tpu_custom_call.1']
    #allocation8 [shape = 'u8[16384]{0}', space=vmem, size = 0x4000, scoped, tag = 'input window, operand 1']
    #allocation9 [shape = 's32[2]{0}', space=sflag, size = 0x8, scoped, tag = 'scoped memory for tpu_custom_call.1']
    #allocation10 [shape = 'u8[16384]{0}', space=vmem, size = 0x4000, scoped, tag = 'input window, operand 2']
    #allocation11 [shape = 'u8[16384]{0}', space=vmem, size = 0x4000, scoped, tag = 'output window, operand 0']
    %9 = vsyncpa [#allocation6], 0
    %s10 = scalar_lea.sflag [#allocation6], 1
    %11 = vsyncpa %s10, 0
    %12 = vsyncpa [#allocation9], 0
    %s13 = scalar_lea.sflag [#allocation9], 1
    %14 = vsyncpa %s13, 0
    %15 = vsyncpa [#allocation7], 0
    %s16 = scalar_lea.sflag [#allocation7], 1
    %17 = vsyncpa %s16, 0
    loop: start=0, step=1, limit=4
    $region2: #{tpu_custom_call.1} parent=1 // loop_pre_header
      _
    $region3: #{tpu_custom_call.1} parent=1 // loop_header
      %s19 = sphi 0, %s23
      %p20 = scmp.ge.s32.totalorder %s19, 4
      %s26 = sphi 0, %s52
      %s27 = sphi 0, %s48
      %s28 = sphi 0, %s44
      %s29 = sphi 0, %s40
      %s30 = sphi 0, %s26
      %s31 = sphi 0, %s27
      %s32 = sphi 0, %s28
      %s33 = sphi 0, %s29
      %s34 = sphi 0, %s30
      %s35 = sphi 0, %s31
      %s36 = sphi 0, %s32
      %s37 = sphi 0, %s33
      %s59 = sphi 0, %s61
      %s62 = sphi 0, %s59
      %s63 = sphi 0, %s62
      %s79 = sphi 0, %s63
      %s89 = sphi 0, %s91
      %s92 = sphi 0, %s89
      %s93 = sphi 0, %s92
      %s109 = sphi 0, %s93
      %s119 = sphi 0, %s121
      %s122 = sphi 0, %s119
      %s123 = sphi 0, %s122
      %s139 = sphi 0, %s123
      %s149 = sphi 0, %s151
      %s152 = sphi 0, %s149
      %s153 = sphi 0, %s152
      %s169 = sphi 0, %s153
      %s179 = sphi 0, %s181
      %s182 = sphi 0, %s179
      %s183 = sphi 0, %s182
      %s199 = sphi 0, %s183
    $region4: #{tpu_custom_call.1} parent=1 // loop_header_branch
      %22 = sbr.rel (%p20) target = $region8
    $region5: #{tpu_custom_call.1} parent=1 // loop_body
      %s24 = ssub.s32 %s19, 1
      %s25 = ssub.s32 %s19, 2
      %s38 = sadd.s32 1, %s29
      %p39 = scmp.ge.s32.totalorder %s38, 1
      %s40 = scalar_select %p39, 0, %s38
      %s41 = sadd.s32 1, %s28
      %s42 = scalar_select %p39, %s41, %s28
      %p43 = scmp.ge.s32.totalorder %s42, 1
      %s44 = scalar_select %p43, 0, %s42
      %s45 = sadd.s32 1, %s27
      %s46 = scalar_select %p43, %s45, %s27
      %p47 = scmp.ge.s32.totalorder %s46, 1
      %s48 = scalar_select %p47, 0, %s46
      %s49 = sadd.s32 1, %s26
      %s50 = scalar_select %p47, %s49, %s26
      %p51 = scmp.ge.s32.totalorder %s50, 2
      %s52 = scalar_select %p51, 0, %s50
      %s53 = ssub.s32 %s26, %s52
      %s54 = ssub.s32 %s27, %s48
      %s55 = sor.u32 %s53, %s54
      %s56 = ssub.s32 %s28, %s44
      %s57 = sor.u32 %s55, %s56
      %p58 = scmp.eq.s32.totalorder %s57, 0
      %s60 = sadd.s32 %s59, 1
      %s61 = scalar_select %p58, %s59, %s60
      %p64 = pneg %p58
      %p65 = scmp.eq.s32.totalorder %s19, 1
      %p66 = por %p64, %p65
      %p67 = scmp.ne.s32.totalorder %s59, %s62
      %p68 = scmp.eq.s32.totalorder %s19, 0
      %p69 = por %p67, %p68
      %p70 = scmp.ne.s32.totalorder %s59, %s62
      %p71 = scmp.eq.s32.totalorder %s24, 1
      %p72 = por %p70, %p71
      %p73 = scmp.ne.s32.totalorder %s62, %s63
      %p74 = scmp.eq.s32.totalorder %s24, 0
      %p75 = por %p73, %p74
      %p76 = scmp.ne.s32.totalorder %s62, %s63
      %p77 = scmp.eq.s32.totalorder %s25, 1
      %p78 = por %p76, %p77
      %p80 = scmp.ne.s32.totalorder %s63, %s79
      %p81 = scmp.eq.s32.totalorder %s25, 0
      %p82 = por %p80, %p81
      %s83 = ssub.s32 %s26, %s52
      %s84 = ssub.s32 %s27, %s48
      %s85 = sor.u32 %s83, %s84
      %s86 = ssub.s32 %s29, %s40
      %s87 = sor.u32 %s85, %s86
      %p88 = scmp.eq.s32.totalorder %s87, 0
      %s90 = sadd.s32 %s89, 1
      %s91 = scalar_select %p88, %s89, %s90
      %p94 = pneg %p88
      %p95 = scmp.eq.s32.totalorder %s19, 1
      %p96 = por %p94, %p95
      %p97 = scmp.ne.s32.totalorder %s89, %s92
      %p98 = scmp.eq.s32.totalorder %s19, 0
      %p99 = por %p97, %p98
      %p100 = scmp.ne.s32.totalorder %s89, %s92
      %p101 = scmp.eq.s32.totalorder %s24, 1
      %p102 = por %p100, %p101
      %p103 = scmp.ne.s32.totalorder %s92, %s93
      %p104 = scmp.eq.s32.totalorder %s24, 0
      %p105 = por %p103, %p104
      %p106 = scmp.ne.s32.totalorder %s92, %s93
      %p107 = scmp.eq.s32.totalorder %s25, 1
      %p108 = por %p106, %p107
      %p110 = scmp.ne.s32.totalorder %s93, %s109
      %p111 = scmp.eq.s32.totalorder %s25, 0
      %p112 = por %p110, %p111
      %s113 = ssub.s32 %s26, %s52
      %s114 = ssub.s32 %s27, %s48
      %s115 = sor.u32 %s113, %s114
      %s116 = ssub.s32 %s29, %s40
      %s117 = sor.u32 %s115, %s116
      %p118 = scmp.eq.s32.totalorder %s117, 0
      %s120 = sadd.s32 %s119, 1
      %s121 = scalar_select %p118, %s119, %s120
      %p124 = pneg %p118
      %p125 = scmp.eq.s32.totalorder %s19, 1
      %p126 = por %p124, %p125
      %p127 = scmp.ne.s32.totalorder %s119, %s122
      %p128 = scmp.eq.s32.totalorder %s19, 0
      %p129 = por %p127, %p128
      %p130 = scmp.ne.s32.totalorder %s119, %s122
      %p131 = scmp.eq.s32.totalorder %s24, 1
      %p132 = por %p130, %p131
      %p133 = scmp.ne.s32.totalorder %s122, %s123
      %p134 = scmp.eq.s32.totalorder %s24, 0
      %p135 = por %p133, %p134
      %p136 = scmp.ne.s32.totalorder %s122, %s123
      %p137 = scmp.eq.s32.totalorder %s25, 1
      %p138 = por %p136, %p137
      %p140 = scmp.ne.s32.totalorder %s123, %s139
      %p141 = scmp.eq.s32.totalorder %s25, 0
      %p142 = por %p140, %p141
      %s143 = ssub.s32 %s26, %s52
      %s144 = ssub.s32 %s28, %s44
      %s145 = sor.u32 %s143, %s144
      %s146 = ssub.s32 %s29, %s40
      %s147 = sor.u32 %s145, %s146
      %p148 = scmp.eq.s32.totalorder %s147, 0
      %s150 = sadd.s32 %s149, 1
      %s151 = scalar_select %p148, %s149, %s150
      %p154 = pneg %p148
      %p155 = scmp.eq.s32.totalorder %s19, 1
      %p156 = por %p154, %p155
      %p157 = scmp.ne.s32.totalorder %s149, %s152
      %p158 = scmp.eq.s32.totalorder %s19, 0
      %p159 = por %p157, %p158
      %p160 = scmp.ne.s32.totalorder %s149, %s152
      %p161 = scmp.eq.s32.totalorder %s24, 1
      %p162 = por %p160, %p161
      %p163 = scmp.ne.s32.totalorder %s152, %s153
      %p164 = scmp.eq.s32.totalorder %s24, 0
      %p165 = por %p163, %p164
      %p166 = scmp.ne.s32.totalorder %s152, %s153
      %p167 = scmp.eq.s32.totalorder %s25, 1
      %p168 = por %p166, %p167
      %p170 = scmp.ne.s32.totalorder %s153, %s169
      %p171 = scmp.eq.s32.totalorder %s25, 0
      %p172 = por %p170, %p171
      %s173 = ssub.s32 %s26, %s52
      %s174 = ssub.s32 %s27, %s48
      %s175 = sor.u32 %s173, %s174
      %s176 = ssub.s32 %s28, %s44
      %s177 = sor.u32 %s175, %s176
      %p178 = scmp.eq.s32.totalorder %s177, 0
      %s180 = sadd.s32 %s179, 1
      %s181 = scalar_select %p178, %s179, %s180
      %p184 = pneg %p178
      %p185 = scmp.eq.s32.totalorder %s19, 1
      %p186 = por %p184, %p185
      %p187 = scmp.ne.s32.totalorder %s179, %s182
      %p188 = scmp.eq.s32.totalorder %s19, 0
      %p189 = por %p187, %p188
      %p190 = scmp.ne.s32.totalorder %s179, %s182
      %p191 = scmp.eq.s32.totalorder %s24, 1
      %p192 = por %p190, %p191
      %p193 = scmp.ne.s32.totalorder %s182, %s183
      %p194 = scmp.eq.s32.totalorder %s24, 0
      %p195 = por %p193, %p194
      %p196 = scmp.ne.s32.totalorder %s182, %s183
      %p197 = scmp.eq.s32.totalorder %s25, 1
      %p198 = por %p196, %p197
      %p200 = scmp.ne.s32.totalorder %s183, %s199
      %p201 = scmp.eq.s32.totalorder %s25, 0
      %p202 = por %p200, %p201
      %p203 = scmp.le.s32.totalorder 1, %s19
      %p204 = scmp.lt.s32.totalorder %s19, 3
      %p205 = pnand %p203, %p204
      %p206 = pneg %p205
      // Predicated region
      $region9: #{tpu_custom_call.1} parent=5 // pred_check
        _
      $region10: #{tpu_custom_call.1} parent=5 // pred_check_branch
        %208 = sbr.rel (%p205) target = $region12
      $region11: #{tpu_custom_call.1} parent=5 // pred_region
        %s209 = ssub.s32 %s19, 1
      $region12: #{tpu_custom_call.1} parent=5 // pred_fallthru
        _
      %p210 = scmp.lt.s32.totalorder %s19, 2
      // Predicated region
      $region13: #{tpu_custom_call.1} parent=5 // pred_check
        %p211 = pneg %p210
      $region14: #{tpu_custom_call.1} parent=5 // pred_check_branch
        %213 = sbr.rel (%p211) target = $region16
      $region15: #{tpu_custom_call.1} parent=5 // pred_region
        // Predicated region
        $region17: #{tpu_custom_call.1} parent=15 // pred_check
          %p214 = pneg %p69
        $region18: #{tpu_custom_call.1} parent=15 // pred_check_branch
          %216 = sbr.rel (%p214) target = $region20
        $region19: #{tpu_custom_call.1} parent=15 // pred_region
          %s217 = sand.u32 %s59, 1
          %s218 = scalar_lea.sflag [#allocation6], %s217
          %s219 = sand.u32 %s59, 1
          %s220 = smul.addr %s219, 16
          %s221 = scalar_lea.vmem [#allocation5], %s220
          %s222 = smul.u32 2, %s27
          %s224 = ssub.s32 256, 256
          %225 = vsyncadd %s218, %s224
          %s226 = sadd.s32 %s28, %s222
          %s227 = smul.addr %s26, 2
          %s228 = sadd.s32 %s226, %s227
          %s229 = smul.addr %s228, 128
          %s230 = scalar_lea.hbm %s0, %s229
          %s231 = sshll.u32 %s221, 4
          %s232 = int_to_ptr.vmem [resolvable:$true] %s231
          %237 = dma.hbm_to_vmem [thread:$0]  %s230, 256, %s232, %s218, 128, 128, 8
        $region20: #{tpu_custom_call.1} parent=15 // pred_fallthru
          _
        // Predicated region
        $region21: #{tpu_custom_call.1} parent=15 // pred_check
          %p238 = pneg %p99
        $region22: #{tpu_custom_call.1} parent=15 // pred_check_branch
          %240 = sbr.rel (%p238) target = $region24
        $region23: #{tpu_custom_call.1} parent=15 // pred_region
          %s241 = sand.u32 %s19, 1
          %s242 = scalar_lea.sflag [#allocation9], %s241
          %s243 = sand.u32 %s89, 1
          %s244 = smul.addr %s243, 16
          %s245 = scalar_lea.vmem [#allocation8], %s244
          %s246 = smul.u32 2, %s27
          %s248 = ssub.s32 256, 256
          %249 = vsyncadd %s242, %s248
          %s250 = sadd.s32 %s29, %s246
          %s251 = smul.addr %s26, 2
          %s252 = sadd.s32 %s250, %s251
          %s253 = smul.addr %s252, 128
          %s254 = scalar_lea.hbm %s1, %s253
          %s255 = sshll.u32 %s245, 4
          %s256 = int_to_ptr.vmem [resolvable:$true] %s255
          %261 = dma.hbm_to_vmem [thread:$0]  %s254, 256, %s256, %s242, 128, 128, 8
        $region24: #{tpu_custom_call.1} parent=15 // pred_fallthru
          _
        // Predicated region
        $region25: #{tpu_custom_call.1} parent=15 // pred_check
          %p262 = pneg %p129
        $region26: #{tpu_custom_call.1} parent=15 // pred_check_branch
          %264 = sbr.rel (%p262) target = $region28
        $region27: #{tpu_custom_call.1} parent=15 // pred_region
          %s265 = sand.u32 %s19, 1
          %s266 = scalar_lea.sflag [#allocation9], %s265
          %s267 = sand.u32 %s119, 1
          %s268 = smul.addr %s267, 16
          %s269 = scalar_lea.vmem [#allocation10], %s268
          %s270 = smul.u32 2, %s27
          %s272 = ssub.s32 256, 256
          %273 = vsyncadd %s266, %s272
          %s274 = sadd.s32 %s29, %s270
          %s275 = smul.addr %s26, 2
          %s276 = sadd.s32 %s274, %s275
          %s277 = smul.addr %s276, 128
          %s278 = scalar_lea.hbm %s2, %s277
          %s279 = sshll.u32 %s269, 4
          %s280 = int_to_ptr.vmem [resolvable:$true] %s279
          %285 = dma.hbm_to_vmem [thread:$0]  %s278, 256, %s280, %s266, 128, 128, 8
        $region28: #{tpu_custom_call.1} parent=15 // pred_fallthru
          _
        // Predicated region
        $region29: #{tpu_custom_call.1} parent=15 // pred_check
          %p286 = pneg %p159
        $region30: #{tpu_custom_call.1} parent=15 // pred_check_branch
          %288 = sbr.rel (%p286) target = $region32
        $region31: #{tpu_custom_call.1} parent=15 // pred_region
          %p289 = scmp.lt.s32.totalorder %s26, 1
          %s290 = scalar_select %p289, %s26, 1
          %p291 = scmp.lt.s32.totalorder %s28, 0
          %s292 = scalar_select %p291, %s28, 0
          %p293 = scmp.lt.s32.totalorder %s29, 0
          %s294 = scalar_select %p293, %s29, 0
          %s295 = sadd.s32 %s294, %s292
          %s296 = sadd.s32 %s295, %s290
          %s297 = smul.addr %s296, 4
          %s298 = scalar_lea.vmem %s3, %s297
        $region32: #{tpu_custom_call.1} parent=15 // pred_fallthru
          _
      $region16: #{tpu_custom_call.1} parent=5 // pred_fallthru
        _
      %p299 = scmp.le.s32.totalorder 1, %s19
      %p300 = scmp.lt.s32.totalorder %s19, 3
      %p301 = pnand %p299, %p300
      %p302 = pneg %p301
      // Predicated region
      $region33: #{tpu_custom_call.1} parent=5 // pred_check
        _
      $region34: #{tpu_custom_call.1} parent=5 // pred_check_branch
        %304 = sbr.rel (%p301) target = $region36
      $region35: #{tpu_custom_call.1} parent=5 // pred_region
        %s305 = ssub.s32 %s19, 1
        %s306 = sand.u32 %s62, 1
        %s307 = scalar_lea.sflag [#allocation6], %s306
        %s308 = sand.u32 %s62, 1
        %s309 = smul.addr %s308, 16
        %s310 = scalar_lea.vmem [#allocation5], %s309
        // Predicated region
        $region37: #{tpu_custom_call.1} parent=35 // pred_check
          %p311 = pneg %p75
        $region38: #{tpu_custom_call.1} parent=35 // pred_check_branch
          %313 = sbr.rel (%p311) target = $region40
        $region39: #{tpu_custom_call.1} parent=35 // pred_region
          %314 = dma.done %s307, 256
        $region40: #{tpu_custom_call.1} parent=35 // pred_fallthru
          _
        %s315 = sand.u32 %s24, 1
        %s316 = scalar_lea.sflag [#allocation9], %s315
        %s317 = sand.u32 %s92, 1
        %s318 = smul.addr %s317, 16
        %s319 = scalar_lea.vmem [#allocation8], %s318
        // Predicated region
        $region41: #{tpu_custom_call.1} parent=35 // pred_check
          %p320 = pneg %p105
        $region42: #{tpu_custom_call.1} parent=35 // pred_check_branch
          %322 = sbr.rel (%p320) target = $region44
        $region43: #{tpu_custom_call.1} parent=35 // pred_region
          %323 = dma.done %s316, 256
        $region44: #{tpu_custom_call.1} parent=35 // pred_fallthru
          _
        %s324 = sand.u32 %s24, 1
        %s325 = scalar_lea.sflag [#allocation9], %s324
        %s326 = sand.u32 %s122, 1
        %s327 = smul.addr %s326, 16
        %s328 = scalar_lea.vmem [#allocation10], %s327
        // Predicated region
        $region45: #{tpu_custom_call.1} parent=35 // pred_check
          %p329 = pneg %p135
        $region46: #{tpu_custom_call.1} parent=35 // pred_check_branch
          %331 = sbr.rel (%p329) target = $region48
        $region47: #{tpu_custom_call.1} parent=35 // pred_region
          %332 = dma.done %s325, 256
        $region48: #{tpu_custom_call.1} parent=35 // pred_fallthru
          _
        %s333 = sand.u32 %s62, 1
        %s334 = scalar_lea.sflag [#allocation6], %s333
        %s335 = sand.u32 %s62, 1
        %s336 = smul.addr %s335, 16
        %s337 = scalar_lea.vmem [#allocation5], %s336
        %p338 = pneg %p75
        %p339 = pneg %p72
        %s340 = sand.u32 %s24, 1
        %s341 = scalar_lea.sflag [#allocation9], %s340
        %s342 = sand.u32 %s92, 1
        %s343 = smul.addr %s342, 16
        %s344 = scalar_lea.vmem [#allocation8], %s343
        %p345 = pneg %p105
        %p346 = pneg %p102
        %s347 = sand.u32 %s24, 1
        %s348 = scalar_lea.sflag [#allocation9], %s347
        %s349 = sand.u32 %s122, 1
        %s350 = smul.addr %s349, 16
        %s351 = scalar_lea.vmem [#allocation10], %s350
        %p352 = pneg %p135
        %p353 = pneg %p132
        %p354 = scmp.lt.s32.totalorder %s30, 1
        %s355 = scalar_select %p354, %s30, 1
        %p356 = scmp.lt.s32.totalorder %s32, 0
        %s357 = scalar_select %p356, %s32, 0
        %p358 = scmp.lt.s32.totalorder %s33, 0
        %s359 = scalar_select %p358, %s33, 0
        %s360 = sadd.s32 %s359, %s357
        %s361 = sadd.s32 %s360, %s355
        %s362 = smul.addr %s361, 4
        %s363 = scalar_lea.vmem %s3, %s362
        %p364 = pneg %p165
        %p365 = pneg %p162
        %p366 = pneg %p195
        %p367 = pneg %p192
        %s368 = sand.u32 %s182, 1
        %s369 = scalar_lea.sflag [#allocation7], %s368
        %s370 = sand.u32 %s182, 1
        %s371 = smul.addr %s370, 16
        %s372 = scalar_lea.vmem [#allocation11], %s371
        %s373 = smul.u32 2, %s31
        %s374 = smul.u32 2, %s31
        %s375 = smul.u32 2, %s31
        %p376 = scmp.lt.s32.totalorder %s30, 1
        %s377 = scalar_select %p376, %s30, 1
        %p378 = scmp.lt.s32.totalorder %s32, 0
        %s379 = scalar_select %p378, %s32, 0
        %p380 = scmp.lt.s32.totalorder %s33, 0
        %s381 = scalar_select %p380, %s33, 0
        %s382 = sadd.s32 %s381, %s379
        %s383 = sadd.s32 %s382, %s377
        %s384 = smul.addr %s383, 4
        %s385 = scalar_lea.vmem %s3, %s384
        %s386 = smul.u32 2, %s31
        %p387 = scmp.eq.s32.totalorder %s33, 0
        // Predicated region
        $region49: #{tpu_custom_call.1} parent=35 // pred_check
          %p388 = pneg %p387
        $region50: #{tpu_custom_call.1} parent=35 // pred_check_branch
          %390 = sbr.rel (%p388) target = $region52
        $region51: #{tpu_custom_call.1} parent=35 // pred_region
          %vm391 = vcmask 7168
          %392 = vst.msk [vmem:[#allocation2] sm:$0xff] %vm391, -inf
          %393 = vst.msk [vmem:[#allocation2 + $0x8] sm:$0xff] %vm391, -inf
          %394 = vst.msk [vmem:[#allocation3] sm:$0xff] %vm391, 0.0
          %395 = vst.msk [vmem:[#allocation3 + $0x8] sm:$0xff] %vm391, 0.0
          %vm396 = vcmask 261120
          %397 = vst.msk [vmem:[#allocation4] sm:$0xff] %vm396, 0.0
          %398 = vst.msk [vmem:[#allocation4 + $0x8] sm:$0xff] %vm396, 0.0
        $region52: #{tpu_custom_call.1} parent=35 // pred_fallthru
          _
        %v399 = vld [vmem:[%s310] sm:$0xff]
        %v400 = vld [vmem:[%s310 + $0x8] sm:$0xff]
        %v401 = vmul.f32 %v399, 0.17677669
        %v402 = vmul.f32 %v400, 0.17677669
        %v403 = vld [vmem:[%s319] sm:$0xff]
        %v404 = vld [vmem:[%s319 + $0x8] sm:$0xff]
        %v405 = vld [vmem:[%s328] sm:$0xff]
        %v406 = vld [vmem:[%s328 + $0x8] sm:$0xff]
        %v407 = vld [vmem:[%s385] sm:$0xf]
        %v408 = vunpack.c.l.bf16 %v407
        %vm409 = vcmask 261120
        %v411 = vsel %vm409, %v401, 0
        %v414 = vsel %vm409, %v403, 0
        %416 = vmatprep.subr.mxu0 0.0
        %417 = vmatpush1.xpose.msra.mxu0 %v414
        %418 = vmatprep.subr.mxu0 0.0
        %419 = vmatpush1.xpose.msra.mxu0 0.0
        %420 = vmatprep.subr.mxu0 0.0
        %421 = vmatpush1.xpose.msra.mxu0 0.0
        %422 = vmatprep.subr.mxu0 0.0
        %423 = vmatpush1.xpose.msra.mxu0 0.0
        %424 = vmatprep.subr.mxu0 0.0
        %425 = vmatpush1.xpose.msra.mxu0 0.0
        %426 = vmatprep.subr.mxu0 0.0
        %427 = vmatpush1.xpose.msra.mxu0 0.0
        %428 = vmatprep.subr.mxu0 0.0
        %429 = vmatpush1.xpose.msra.mxu0 0.0
        %430 = vmatprep.subr.mxu0 0.0
        %431 = vmatpush1.xpose.msra.mxu0 0.0
        %432 = vmatprep.subr.mxu0 0.0
        %433 = vmatpush1.xpose.msra.mxu0 0.0
        %434 = vmatprep.subr.mxu0 0.0
        %435 = vmatpush1.xpose.msra.mxu0 0.0
        %436 = vmatprep.subr.mxu0 0.0
        %437 = vmatpush1.xpose.msra.mxu0 0.0
        %438 = vmatprep.subr.mxu0 0.0
        %439 = vmatpush1.xpose.msra.mxu0 0.0
        %440 = vmatprep.subr.mxu0 0.0
        %441 = vmatpush1.xpose.msra.mxu0 0.0
        %442 = vmatprep.subr.mxu0 0.0
        %443 = vmatpush1.xpose.msra.mxu0 0.0
        %444 = vmatprep.subr.mxu0 0.0
        %445 = vmatpush1.xpose.msra.mxu0 0.0
        %446 = vmatprep.subr.mxu0 0.0
        %447 = vmatpush1.xpose.msra.mxu0 0.0
        %448 = vmatprep.subr.mxu0 0.0
        %449 = vmatpush1.xpose.msra.mxu0 0.0
        %450 = vmatprep.subr.mxu0 0.0
        %451 = vmatpush1.xpose.msra.mxu0 0.0
        %452 = vmatprep.subr.mxu0 0.0
        %453 = vmatpush1.xpose.msra.mxu0 0.0
        %454 = vmatprep.subr.mxu0 0.0
        %455 = vmatpush1.xpose.msra.mxu0 0.0
        %456 = vmatprep.subr.mxu0 0.0
        %457 = vmatpush1.xpose.msra.mxu0 0.0
        %458 = vmatprep.subr.mxu0 0.0
        %459 = vmatpush1.xpose.msra.mxu0 0.0
        %460 = vmatprep.subr.mxu0 0.0
        %461 = vmatpush1.xpose.msra.mxu0 0.0
        %462 = vmatprep.subr.mxu0 0.0
        %463 = vmatpush1.xpose.msra.mxu0 0.0
        %464 = vmatprep.subr.mxu0 0.0
        %465 = vmatpush1.xpose.msra.mxu0 0.0
        %466 = vmatprep.subr.mxu0 0.0
        %467 = vmatpush1.xpose.msra.mxu0 0.0
        %468 = vmatprep.subr.mxu0 0.0
        %469 = vmatpush1.xpose.msra.mxu0 0.0
        %470 = vmatprep.subr.mxu0 0.0
        %471 = vmatpush1.xpose.msra.mxu0 0.0
        %472 = vmatprep.subr.mxu0 0.0
        %473 = vmatpush1.xpose.msra.mxu0 0.0
        %474 = vmatprep.subr.mxu0 0.0
        %475 = vmatpush1.xpose.msra.mxu0 0.0
        %476 = vmatprep.subr.mxu0 0.0
        %477 = vmatpush1.xpose.msra.mxu0 0.0
        %478 = vmatprep.subr.mxu0 0.0
        %479 = vmatpush1.xpose.msra.mxu0 0.0
        %480 = vmatprep.mubr.f32.mxu0 0.0
        %481 = vmatmul.mubr.f32.gmra.mrb[0].mxu0 %v411
        %v482 = vpop.f32.mrb[0].mxu0
        %v483 = vadd.f32 %v408, %v482
        %v484 = vpop.f32.mrb[0].mxu0
        %485 = vdwg.mxu0
        %v487 = vsel %vm409, %v402, 0
        %v490 = vsel %vm409, %v404, 0
        %492 = vmatprep.subr.mxu0 0.0
        %493 = vmatpush1.xpose.msra.mxu0 %v490
        %494 = vmatprep.subr.mxu0 0.0
        %495 = vmatpush1.xpose.msra.mxu0 0.0
        %496 = vmatprep.subr.mxu0 0.0
        %497 = vmatpush1.xpose.msra.mxu0 0.0
        %498 = vmatprep.subr.mxu0 0.0
        %499 = vmatpush1.xpose.msra.mxu0 0.0
        %500 = vmatprep.subr.mxu0 0.0
        %501 = vmatpush1.xpose.msra.mxu0 0.0
        %502 = vmatprep.subr.mxu0 0.0
        %503 = vmatpush1.xpose.msra.mxu0 0.0
        %504 = vmatprep.subr.mxu0 0.0
        %505 = vmatpush1.xpose.msra.mxu0 0.0
        %506 = vmatprep.subr.mxu0 0.0
        %507 = vmatpush1.xpose.msra.mxu0 0.0
        %508 = vmatprep.subr.mxu0 0.0
        %509 = vmatpush1.xpose.msra.mxu0 0.0
        %510 = vmatprep.subr.mxu0 0.0
        %511 = vmatpush1.xpose.msra.mxu0 0.0
        %512 = vmatprep.subr.mxu0 0.0
        %513 = vmatpush1.xpose.msra.mxu0 0.0
        %514 = vmatprep.subr.mxu0 0.0
        %515 = vmatpush1.xpose.msra.mxu0 0.0
        %516 = vmatprep.subr.mxu0 0.0
        %517 = vmatpush1.xpose.msra.mxu0 0.0
        %518 = vmatprep.subr.mxu0 0.0
        %519 = vmatpush1.xpose.msra.mxu0 0.0
        %520 = vmatprep.subr.mxu0 0.0
        %521 = vmatpush1.xpose.msra.mxu0 0.0
        %522 = vmatprep.subr.mxu0 0.0
        %523 = vmatpush1.xpose.msra.mxu0 0.0
        %524 = vmatprep.subr.mxu0 0.0
        %525 = vmatpush1.xpose.msra.mxu0 0.0
        %526 = vmatprep.subr.mxu0 0.0
        %527 = vmatpush1.xpose.msra.mxu0 0.0
        %528 = vmatprep.subr.mxu0 0.0
        %529 = vmatpush1.xpose.msra.mxu0 0.0
        %530 = vmatprep.subr.mxu0 0.0
        %531 = vmatpush1.xpose.msra.mxu0 0.0
        %532 = vmatprep.subr.mxu0 0.0
        %533 = vmatpush1.xpose.msra.mxu0 0.0
        %534 = vmatprep.subr.mxu0 0.0
        %535 = vmatpush1.xpose.msra.mxu0 0.0
        %536 = vmatprep.subr.mxu0 0.0
        %537 = vmatpush1.xpose.msra.mxu0 0.0
        %538 = vmatprep.subr.mxu0 0.0
        %539 = vmatpush1.xpose.msra.mxu0 0.0
        %540 = vmatprep.subr.mxu0 0.0
        %541 = vmatpush1.xpose.msra.mxu0 0.0
        %542 = vmatprep.subr.mxu0 0.0
        %543 = vmatpush1.xpose.msra.mxu0 0.0
        %544 = vmatprep.subr.mxu0 0.0
        %545 = vmatpush1.xpose.msra.mxu0 0.0
        %546 = vmatprep.subr.mxu0 0.0
        %547 = vmatpush1.xpose.msra.mxu0 0.0
        %548 = vmatprep.subr.mxu0 0.0
        %549 = vmatpush1.xpose.msra.mxu0 0.0
        %550 = vmatprep.subr.mxu0 0.0
        %551 = vmatpush1.xpose.msra.mxu0 0.0
        %552 = vmatprep.subr.mxu0 0.0
        %553 = vmatpush1.xpose.msra.mxu0 0.0
        %554 = vmatprep.subr.mxu0 0.0
        %555 = vmatpush1.xpose.msra.mxu0 0.0
        %556 = vmatprep.mubr.f32.mxu0 0.0
        %557 = vmatmul.mubr.f32.gmra.mrb[0].mxu0 %v487
        %v558 = vpop.f32.mrb[0].mxu0
        %v559 = vadd.f32 %v408, %v558
        %v560 = vpop.f32.mrb[0].mxu0
        %561 = vdwg.mxu0
        %v562 = vld [vmem:[#allocation2] sm:$0xff]
        %v563 = vld [vmem:[#allocation2 + $0x8] sm:$0xff]
        %vm564 = vcmask 64512
        %v565 = vsel %vm564, %v483, -inf
        %566 = vmax.xlane.f32.xlu0 %v565
        %v567 = vpop.xlane.xlu0 %566
        %v568 = vsel %vm564, %v559, -inf
        %569 = vmax.xlane.f32.xlu0 %v568
        %v570 = vpop.xlane.xlu0 %569
        %v571 = vmax.f32 %v562, %v567
        %v572 = vmax.f32 %v563, %v570
        %v573 = vsub.f32 %v562, %v571
        %v574 = vsub.f32 %v563, %v572
        %v575 = vmul.f32 %v573, 1.442695
        %v576 = vpow.pop %v575
        %v577 = vmul.f32 %v574, 1.442695
        %v578 = vpow.pop %v577
        %580 = vset.pattern.permute.xlu0 0
        %581 = vperm.xlu0 %580, %v571
        %v582 = vpop.permute.xlu0 %581
        %585 = vset.pattern.permute.xlu0 0
        %586 = vperm.xlu0 %585, %v572
        %v587 = vpop.permute.xlu0 %586
        %v589 = vsub.f32 %v483, %v582
        %v590 = vsub.f32 %v559, %v587
        %v591 = vmul.f32 %v589, 1.442695
        %v592 = vpow.pop %v591
        %v593 = vmul.f32 %v590, 1.442695
        %v594 = vpow.pop %v593
        %v595 = vld [vmem:[#allocation3] sm:$0xff]
        %v596 = vld [vmem:[#allocation3 + $0x8] sm:$0xff]
        %v597 = vmul.f32 %v576, %v595
        %v598 = vmul.f32 %v578, %v596
        %v599 = vsel %vm564, %v592, 0.0
        %600 = vadd.xlane.f32.xlu0 %v599
        %v601 = vpop.xlane.xlu0 %600
        %v602 = vsel %vm564, %v594, 0.0
        %603 = vadd.xlane.f32.xlu0 %v602
        %v604 = vpop.xlane.xlu0 %603
        %v605 = vadd.f32 %v597, %v601
        %v606 = vadd.f32 %v598, %v604
        %vm607 = vcmask 7168
        %608 = vst.msk [vmem:[#allocation3] sm:$0xff] %vm607, %v605
        %609 = vst.msk [vmem:[#allocation3 + $0x8] sm:$0xff] %vm607, %v606
        %v610 = vld [vmem:[#allocation4] sm:$0xff]
        %v611 = vld [vmem:[#allocation4 + $0x8] sm:$0xff]
        %613 = vset.pattern.permute.xlu0 0
        %614 = vperm.xlu0 %613, %v576
        %v615 = vpop.permute.xlu0 %614
        %618 = vset.pattern.permute.xlu0 0
        %619 = vperm.xlu0 %618, %v578
        %v620 = vpop.permute.xlu0 %619
        %v622 = vmul.f32 %v615, %v610
        %v623 = vmul.f32 %v620, %v611
        %v625 = vsel %vm564, %v592, 0
        %627 = vmatprep.subr.mxu0 0.0
        %628 = vmatpush1.msra.mxu0 %v405
        %629 = vmatprep.subr.mxu0 0.0
        %630 = vmatpush1.msra.mxu0 0.0
        %631 = vmatprep.subr.mxu0 0.0
        %632 = vmatpush1.msra.mxu0 0.0
        %633 = vmatprep.subr.mxu0 0.0
        %634 = vmatpush1.msra.mxu0 0.0
        %635 = vmatprep.subr.mxu0 0.0
        %636 = vmatpush1.msra.mxu0 0.0
        %637 = vmatprep.subr.mxu0 0.0
        %638 = vmatpush1.msra.mxu0 0.0
        %639 = vmatprep.subr.mxu0 0.0
        %640 = vmatpush1.msra.mxu0 0.0
        %641 = vmatprep.subr.mxu0 0.0
        %642 = vmatpush1.msra.mxu0 0.0
        %643 = vmatprep.subr.mxu0 0.0
        %644 = vmatpush1.msra.mxu0 0.0
        %645 = vmatprep.subr.mxu0 0.0
        %646 = vmatpush1.msra.mxu0 0.0
        %647 = vmatprep.subr.mxu0 0.0
        %648 = vmatpush1.msra.mxu0 0.0
        %649 = vmatprep.subr.mxu0 0.0
        %650 = vmatpush1.msra.mxu0 0.0
        %651 = vmatprep.subr.mxu0 0.0
        %652 = vmatpush1.msra.mxu0 0.0
        %653 = vmatprep.subr.mxu0 0.0
        %654 = vmatpush1.msra.mxu0 0.0
        %655 = vmatprep.subr.mxu0 0.0
        %656 = vmatpush1.msra.mxu0 0.0
        %657 = vmatprep.subr.mxu0 0.0
        %658 = vmatpush1.msra.mxu0 0.0
        %659 = vmatprep.subr.mxu0 0.0
        %660 = vmatpush1.msra.mxu0 0.0
        %661 = vmatprep.subr.mxu0 0.0
        %662 = vmatpush1.msra.mxu0 0.0
        %663 = vmatprep.subr.mxu0 0.0
        %664 = vmatpush1.msra.mxu0 0.0
        %665 = vmatprep.subr.mxu0 0.0
        %666 = vmatpush1.msra.mxu0 0.0
        %667 = vmatprep.subr.mxu0 0.0
        %668 = vmatpush1.msra.mxu0 0.0
        %669 = vmatprep.subr.mxu0 0.0
        %670 = vmatpush1.msra.mxu0 0.0
        %671 = vmatprep.subr.mxu0 0.0
        %672 = vmatpush1.msra.mxu0 0.0
        %673 = vmatprep.subr.mxu0 0.0
        %674 = vmatpush1.msra.mxu0 0.0
        %675 = vmatprep.subr.mxu0 0.0
        %676 = vmatpush1.msra.mxu0 0.0
        %677 = vmatprep.subr.mxu0 0.0
        %678 = vmatpush1.msra.mxu0 0.0
        %679 = vmatprep.subr.mxu0 0.0
        %680 = vmatpush1.msra.mxu0 0.0
        %681 = vmatprep.subr.mxu0 0.0
        %682 = vmatpush1.msra.mxu0 0.0
        %683 = vmatprep.subr.mxu0 0.0
        %684 = vmatpush1.msra.mxu0 0.0
        %685 = vmatprep.subr.mxu0 0.0
        %686 = vmatpush1.msra.mxu0 0.0
        %687 = vmatprep.subr.mxu0 0.0
        %688 = vmatpush1.msra.mxu0 0.0
        %689 = vmatprep.subr.mxu0 0.0
        %690 = vmatpush1.msra.mxu0 0.0
        %691 = vmatprep.mubr.f32.mxu0 0.0
        %692 = vmatmul.mubr.f32.gmra.mrb[0].mxu0 %v625
        %v693 = vpop.f32.mrb[0].mxu0
        %v694 = vadd.f32 0.0, %v693
        %v695 = vpop.f32.mrb[0].mxu0
        %696 = vdwg.mxu0
        %v698 = vsel %vm564, %v594, 0
        %700 = vmatprep.subr.mxu0 0.0
        %701 = vmatpush1.msra.mxu0 %v406
        %702 = vmatprep.subr.mxu0 0.0
        %703 = vmatpush1.msra.mxu0 0.0
        %704 = vmatprep.subr.mxu0 0.0
        %705 = vmatpush1.msra.mxu0 0.0
        %706 = vmatprep.subr.mxu0 0.0
        %707 = vmatpush1.msra.mxu0 0.0
        %708 = vmatprep.subr.mxu0 0.0
        %709 = vmatpush1.msra.mxu0 0.0
        %710 = vmatprep.subr.mxu0 0.0
        %711 = vmatpush1.msra.mxu0 0.0
        %712 = vmatprep.subr.mxu0 0.0
        %713 = vmatpush1.msra.mxu0 0.0
        %714 = vmatprep.subr.mxu0 0.0
        %715 = vmatpush1.msra.mxu0 0.0
        %716 = vmatprep.subr.mxu0 0.0
        %717 = vmatpush1.msra.mxu0 0.0
        %718 = vmatprep.subr.mxu0 0.0
        %719 = vmatpush1.msra.mxu0 0.0
        %720 = vmatprep.subr.mxu0 0.0
        %721 = vmatpush1.msra.mxu0 0.0
        %722 = vmatprep.subr.mxu0 0.0
        %723 = vmatpush1.msra.mxu0 0.0
        %724 = vmatprep.subr.mxu0 0.0
        %725 = vmatpush1.msra.mxu0 0.0
        %726 = vmatprep.subr.mxu0 0.0
        %727 = vmatpush1.msra.mxu0 0.0
        %728 = vmatprep.subr.mxu0 0.0
        %729 = vmatpush1.msra.mxu0 0.0
        %730 = vmatprep.subr.mxu0 0.0
        %731 = vmatpush1.msra.mxu0 0.0
        %732 = vmatprep.subr.mxu0 0.0
        %733 = vmatpush1.msra.mxu0 0.0
        %734 = vmatprep.subr.mxu0 0.0
        %735 = vmatpush1.msra.mxu0 0.0
        %736 = vmatprep.subr.mxu0 0.0
        %737 = vmatpush1.msra.mxu0 0.0
        %738 = vmatprep.subr.mxu0 0.0
        %739 = vmatpush1.msra.mxu0 0.0
        %740 = vmatprep.subr.mxu0 0.0
        %741 = vmatpush1.msra.mxu0 0.0
        %742 = vmatprep.subr.mxu0 0.0
        %743 = vmatpush1.msra.mxu0 0.0
        %744 = vmatprep.subr.mxu0 0.0
        %745 = vmatpush1.msra.mxu0 0.0
        %746 = vmatprep.subr.mxu0 0.0
        %747 = vmatpush1.msra.mxu0 0.0
        %748 = vmatprep.subr.mxu0 0.0
        %749 = vmatpush1.msra.mxu0 0.0
        %750 = vmatprep.subr.mxu0 0.0
        %751 = vmatpush1.msra.mxu0 0.0
        %752 = vmatprep.subr.mxu0 0.0
        %753 = vmatpush1.msra.mxu0 0.0
        %754 = vmatprep.subr.mxu0 0.0
        %755 = vmatpush1.msra.mxu0 0.0
        %756 = vmatprep.subr.mxu0 0.0
        %757 = vmatpush1.msra.mxu0 0.0
        %758 = vmatprep.subr.mxu0 0.0
        %759 = vmatpush1.msra.mxu0 0.0
        %760 = vmatprep.subr.mxu0 0.0
        %761 = vmatpush1.msra.mxu0 0.0
        %762 = vmatprep.subr.mxu0 0.0
        %763 = vmatpush1.msra.mxu0 0.0
        %764 = vmatprep.mubr.f32.mxu0 0.0
        %765 = vmatmul.mubr.f32.gmra.mrb[0].mxu0 %v698
        %v766 = vpop.f32.mrb[0].mxu0
        %v767 = vadd.f32 0.0, %v766
        %v768 = vpop.f32.mrb[0].mxu0
        %769 = vdwg.mxu0
        %v770 = vadd.f32 %v622, %v694
        %v771 = vadd.f32 %v623, %v767
        %772 = vst.msk [vmem:[#allocation4] sm:$0xff] %vm409, %v770
        %773 = vst.msk [vmem:[#allocation4 + $0x8] sm:$0xff] %vm409, %v771
        %774 = vst.msk [vmem:[#allocation2] sm:$0xff] %vm607, %v571
        %775 = vst.msk [vmem:[#allocation2 + $0x8] sm:$0xff] %vm607, %v572
        // Predicated region
        $region53: #{tpu_custom_call.1} parent=35 // pred_check
          %p776 = pneg %p387
        $region54: #{tpu_custom_call.1} parent=35 // pred_check_branch
          %778 = sbr.rel (%p776) target = $region56
        $region55: #{tpu_custom_call.1} parent=35 // pred_region
          %v779 = vld [vmem:[#allocation3] sm:$0xff]
          %v780 = vld [vmem:[#allocation3 + $0x8] sm:$0xff]
          %v781 = vrcp.pop %v779
          %v782 = vrcp.pop %v780
          %v783 = vld [vmem:[#allocation4] sm:$0xff]
          %v784 = vld [vmem:[#allocation4 + $0x8] sm:$0xff]
          %786 = vset.pattern.permute.xlu0 0
          %787 = vperm.xlu0 %786, %v781
          %v788 = vpop.permute.xlu0 %787
          %791 = vset.pattern.permute.xlu0 0
          %792 = vperm.xlu0 %791, %v782
          %v793 = vpop.permute.xlu0 %792
          %v795 = vmul.f32 %v783, %v788
          %v796 = vmul.f32 %v784, %v793
          %797 = vst.msk [vmem:[%s372] sm:$0xff] %vm409, %v795
          %798 = vst.msk [vmem:[%s372 + $0x8] sm:$0xff] %vm409, %v796
        $region56: #{tpu_custom_call.1} parent=35 // pred_fallthru
          _
        %s799 = sand.u32 %s182, 1
        %s800 = scalar_lea.sflag [#allocation7], %s799
        %s801 = sand.u32 %s182, 1
        %s802 = smul.addr %s801, 16
        %s803 = scalar_lea.vmem [#allocation11], %s802
        // Predicated region
        $region57: #{tpu_custom_call.1} parent=35 // pred_check
          %p804 = pneg %p192
        $region58: #{tpu_custom_call.1} parent=35 // pred_check_branch
          %806 = sbr.rel (%p804) target = $region60
        $region59: #{tpu_custom_call.1} parent=35 // pred_region
          %s807 = smul.u32 2, %s31
          %s809 = ssub.s32 256, 256
          %810 = vsyncadd %s800, %s809
          %s811 = sadd.s32 %s32, %s807
          %s812 = smul.addr %s30, 2
          %s813 = sadd.s32 %s811, %s812
          %s814 = smul.addr %s813, 128
          %s815 = scalar_lea.hbm %s4, %s814
          %s816 = sshll.u32 %s803, 4
          %s817 = int_to_ptr.vmem [resolvable:$true] %s816
          %822 = dma.vmem_to_hbm [thread:$0]  %s817, 256, %s815, %s800, 128, 128, 8
        $region60: #{tpu_custom_call.1} parent=35 // pred_fallthru
          _
      $region36: #{tpu_custom_call.1} parent=5 // pred_fallthru
        _
      %p823 = scmp.le.s32.totalorder 2, %s19
      // Predicated region
      $region61: #{tpu_custom_call.1} parent=5 // pred_check
        %p824 = pneg %p823
      $region62: #{tpu_custom_call.1} parent=5 // pred_check_branch
        %826 = sbr.rel (%p824) target = $region64
      $region63: #{tpu_custom_call.1} parent=5 // pred_region
        %s827 = ssub.s32 %s19, 2
        // Predicated region
        $region65: #{tpu_custom_call.1} parent=63 // pred_check
          %p828 = pneg %p198
        $region66: #{tpu_custom_call.1} parent=63 // pred_check_branch
          %830 = sbr.rel (%p828) target = $region68
        $region67: #{tpu_custom_call.1} parent=63 // pred_region
          %s831 = sand.u32 %s183, 1
          %s832 = scalar_lea.sflag [#allocation7], %s831
          %s833 = sand.u32 %s183, 1
          %s834 = smul.addr %s833, 16
          %s835 = scalar_lea.vmem [#allocation11], %s834
          %836 = dma.done %s832, 256
        $region68: #{tpu_custom_call.1} parent=63 // pred_fallthru
          _
      $region64: #{tpu_custom_call.1} parent=5 // pred_fallthru
        _
    $region6: #{tpu_custom_call.1} parent=1 // loop_footer
      %s23 = sadd.s32 1, %s19
    $region7: #{tpu_custom_call.1} parent=1 // loop_footer_branch
      %18 = sbr.rel target = $region3
    $region8: #{tpu_custom_call.1} parent=1 // loop_exit
      _
    %837 = vsyncpa [#allocation6], 1
    %s838 = scalar_lea.sflag [#allocation6], 1
    %839 = vsyncpa %s838, 1
    %840 = vsyncpa [#allocation9], 1
    %s841 = scalar_lea.sflag [#allocation9], 1
    %842 = vsyncpa %s841, 1
    %843 = vsyncpa [#allocation7], 1
    %s844 = scalar_lea.sflag [#allocation7], 1
    %845 = vsyncpa %s844, 1

</llo_original>
